<compile_context>
chip_gen: v7x
topology: tpu7x:2x2x1
jax: 0.10.0
libtpu: 0.0.40
codegen_flags: <defaults>
</compile_context>

<pallas_src>
import functools

import jax
import jax.numpy as jnp
from jax.experimental import pallas as pl
from jax.experimental.pallas import tpu as pltpu


# ----------------------------------------------------------------------------
# Pallas kernel: stacked forward rDFT -> diag-scale + fused relu/softshrink ->
#                two accumulating inverse-rDFT matmuls + hidden path + residual
# ----------------------------------------------------------------------------
def _fgc_kernel(x_ref, p_ref, wf_ref, ci_ref, si_ref, o_ref, *,
                lam, f_pad, compute_dtype):
    """One lane-tile of FourierGraphConv.

    x_ref : (N, T)     input columns (lane-dense), f32
    p_ref : (4, T)     rows = [diag(W_real), diag(W_imag), diag(w_hidden), b_hidden]
    wf_ref: (2*Fp, N)  stacked forward rDFT basis [cos ; -sin]   (grid-invariant)
    ci_ref: (N, Fp)    inverse rDFT basis, real part             (grid-invariant)
    si_ref: (N, Fp)    inverse rDFT basis, imag part             (grid-invariant)
    o_ref : (N, T)     output
    """
    x = x_ref[...]                                      # (N, T) f32
    p = p_ref[...]                                      # (4, T) f32

    # Forward real-DFT: ONE stacked MXU matmul (2*Fp, N) @ (N, T) -> (2*Fp, T).
    y = jnp.dot(wf_ref[...], x.astype(compute_dtype),
                preferred_element_type=jnp.float32)

    # diag(weight) scale + fused relu/softshrink (== max(v - lam, 0), lam >= 0),
    # on free sublane slices of y (f_pad % 8 == 0): no concatenate, no copy.
    yr = jnp.maximum(y[:f_pad, :] * p[0:1, :] - lam, 0.0)    # (Fp, T)
    yi = jnp.maximum(y[f_pad:, :] * p[1:2, :] - lam, 0.0)    # (Fp, T)

    # Inverse real-DFT as two accumulating matmuls: x_out = ci @ yr + si @ yi.
    x_out = jnp.dot(ci_ref[...], yr.astype(compute_dtype),
                    preferred_element_type=jnp.float32)
    x_out = x_out + jnp.dot(si_ref[...], yi.astype(compute_dtype),
                            preferred_element_type=jnp.float32)

    # Hidden path: einsum('bnd,dd->bnd') keeps only diag(w_hidden) -> scale+bias+relu.
    x_hidden = jnp.maximum(x * p[2:3, :] + p[3:4, :], 0.0)

    o_ref[...] = (x_out + x_hidden).astype(o_ref.dtype)


# ----------------------------------------------------------------------------
# Glue: stacked / split, zero-padded real-DFT basis matrices (norm='ortho'),
#       matching torch rfft/irfft along dim=1.
# ----------------------------------------------------------------------------
def _make_dft_matrices(N, f_pad):
    F_ = N // 2 + 1
    k = jnp.arange(F_, dtype=jnp.float32)
    n = jnp.arange(N, dtype=jnp.float32)
    ang = 2.0 * jnp.pi * k[:, None] * n[None, :] / N           # (F, N)
    scale = 1.0 / jnp.sqrt(jnp.float32(N))

    cf = jnp.cos(ang) * scale                                   # forward real (F, N)
    sf = -jnp.sin(ang) * scale                                  # forward imag (F, N)

    # inverse (C2R, ortho): x[n] = 1/sqrt(N) * [ Xr0 + Xr_Nyq*(-1)^n
    #                         + sum_{0<k<N/2} 2*(Xr cos - Xi sin) ]
    c_coef = jnp.full((F_,), 2.0, jnp.float32).at[0].set(1.0)
    s_coef = jnp.full((F_,), 2.0, jnp.float32).at[0].set(0.0)
    if N % 2 == 0:
        c_coef = c_coef.at[F_ - 1].set(1.0)
        s_coef = s_coef.at[F_ - 1].set(0.0)   # imag of DC/Nyquist is exactly 0 upstream

    ang_inv = 2.0 * jnp.pi * n[:, None] * k[None, :] / N        # (N, F)
    ci = c_coef[None, :] * jnp.cos(ang_inv) * scale             # (N, F)
    si = -s_coef[None, :] * jnp.sin(ang_inv) * scale            # (N, F)

    pad = f_pad - F_
    cf = jnp.pad(cf, ((0, pad), (0, 0)))
    sf = jnp.pad(sf, ((0, pad), (0, 0)))
    ci = jnp.pad(ci, ((0, 0), (0, pad)))
    si = jnp.pad(si, ((0, 0), (0, pad)))

    wf = jnp.concatenate([cf, sf], axis=0)                      # (2*Fp, N)
    return wf, ci, si


# ----------------------------------------------------------------------------
# VMEM / tiling helpers
# ----------------------------------------------------------------------------
def _vmem_cap_bytes():
    phys = 64 << 20                      # conservative default = v7x physical VMEM
    try:
        info = pltpu.get_tpu_info()
        phys = int(getattr(info, "vmem_capacity_bytes", phys))
    except Exception:
        pass
    return max(phys - (16 << 20), 16 << 20)   # leave headroom for compiler scratch


def _vmem_bytes(N, T, f_pad, basis_bytes):
    blk = N * T * 4                                  # x block (f32)
    out = N * T * 4                                  # out block
    par = 8 * T * 4                                  # (4,T) padded to 8 sublanes
    bases = (2 * f_pad * N + 2 * N * f_pad) * basis_bytes   # single-buffered
    inter = (4 * f_pad * T + 2 * N * T) * 4          # y, yr/yi, x_out/x_hidden
    return 2 * (blk + out + par) + bases + inter     # revolving blocks double-buffered


def _vmem_limit(need, cap):
    want = int(need * 1.5) + (8 << 20)
    return int(min(max(want, 32 << 20), cap))


def _pick_lane_tile(m, N, f_pad, basis_bytes, vmem_cap, min_steps):
    """m is a multiple of 128.  Pick the largest lane tile (multiple of 128) that
    divides m, fits VMEM, and (if possible) leaves >= min_steps grid steps."""
    cands = [t for t in (1024, 512, 384, 256, 128) if t <= m and m % t == 0]
    if not cands:
        return m
    multi = [t for t in cands if m // t >= min_steps]
    pool = multi if multi else cands
    for t in pool:
        if _vmem_bytes(N, t, f_pad, basis_bytes) <= vmem_cap:
            return t
    return pool[-1]


def _invariant_spec(block_shape, index_map):
    # Grid-invariant operand: single-buffered (its block never changes).
    try:
        return pl.BlockSpec(block_shape, index_map, pipeline_mode=pl.Buffered(1))
    except TypeError:   # older jax without pipeline_mode on BlockSpec
        return pl.BlockSpec(block_shape, index_map)


# ----------------------------------------------------------------------------
# Wrapper
# ----------------------------------------------------------------------------
def fourier_graph_conv(x, weight_real, weight_imag, w_hidden, b_hidden,
                       sparsity_threshold=0.01, use_bf16_matmul=True):
    assert sparsity_threshold >= 0.0, "fused relu+softshrink requires lam >= 0"
    B, N, D = x.shape
    F_ = N // 2 + 1
    f_pad = pl.cdiv(F_, 8) * 8                       # sublane-aligned frequency axis

    compute_dtype = jnp.bfloat16 if use_bf16_matmul else jnp.float32
    wf, ci, si = _make_dft_matrices(N, f_pad)
    wf = wf.astype(compute_dtype)
    ci = ci.astype(compute_dtype)
    si = si.astype(compute_dtype)
    basis_bytes = jnp.dtype(compute_dtype).itemsize

    kernel = functools.partial(_fgc_kernel, lam=float(sparsity_threshold),
                               f_pad=f_pad, compute_dtype=compute_dtype)
    vmem_cap = _vmem_cap_bytes()

    if D % 128 == 0:
        # ---- Path A: no wrapper repack (saves one full HBM read+write of x & out).
        dr = jnp.diagonal(weight_real, axis1=1, axis2=2)                    # (B, D)
        di = jnp.diagonal(weight_imag, axis1=1, axis2=2)                    # (B, D)
        whd = jnp.broadcast_to(jnp.diagonal(w_hidden)[None, :], (B, D))
        bh = jnp.broadcast_to(b_hidden[None, :], (B, D))
        params = jnp.stack([dr, di, whd, bh], axis=1)                       # (B, 4, D)

        min_steps = 1 if B >= 2 else 2
        Td = _pick_lane_tile(D, N, f_pad, basis_bytes, vmem_cap, min_steps)
        grid = (B, D // Td)
        need = _vmem_bytes(N, Td, f_pad, basis_bytes)

        return pl.pallas_call(
            kernel,
            out_shape=jax.ShapeDtypeStruct((B, N, D), x.dtype),
            grid_spec=pltpu.PrefetchScalarGridSpec(
                num_scalar_prefetch=0,
                grid=grid,
                in_specs=[
                    pl.BlockSpec((pl.Squeezed(), N, Td), lambda b, j: (b, 0, j)),
                    pl.BlockSpec((pl.Squeezed(), 4, Td), lambda b, j: (b, 0, j)),
                    _invariant_spec((2 * f_pad, N), lambda b, j: (0, 0)),
                    _invariant_spec((N, f_pad), lambda b, j: (0, 0)),
                    _invariant_spec((N, f_pad), lambda b, j: (0, 0)),
                ],
                out_specs=pl.BlockSpec((pl.Squeezed(), N, Td), lambda b, j: (b, 0, j)),
            ),
            compiler_params=pltpu.CompilerParams(
                dimension_semantics=("parallel", "parallel"),
                vmem_limit_bytes=_vmem_limit(need, vmem_cap)),
        )(x, params, wf, ci, si)

    # ---- Path B: lane-dense repack (N, B*D), zero-padded to a multiple of 128.
    M = B * D
    M_pad = pl.cdiv(M, 128) * 128
    x2 = jnp.transpose(x, (1, 0, 2)).reshape(N, M)                          # col = b*D + d
    dr = jnp.diagonal(weight_real, axis1=1, axis2=2).reshape(M)
    di = jnp.diagonal(weight_imag, axis1=1, axis2=2).reshape(M)
    whd = jnp.tile(jnp.diagonal(w_hidden), B)
    bh = jnp.tile(b_hidden, B)
    params = jnp.stack([dr, di, whd, bh], axis=0)                           # (4, M)
    if M_pad != M:
        x2 = jnp.pad(x2, ((0, 0), (0, M_pad - M)))
        params = jnp.pad(params, ((0, 0), (0, M_pad - M)))

    T = _pick_lane_tile(M_pad, N, f_pad, basis_bytes, vmem_cap, min_steps=2)
    grid = (M_pad // T,)
    need = _vmem_bytes(N, T, f_pad, basis_bytes)

    out2 = pl.pallas_call(
        kernel,
        out_shape=jax.ShapeDtypeStruct((N, M_pad), x.dtype),
        grid_spec=pltpu.PrefetchScalarGridSpec(
            num_scalar_prefetch=0,
            grid=grid,
            in_specs=[
                pl.BlockSpec((N, T), lambda j: (0, j)),            # x (lane-dense)
                pl.BlockSpec((4, T), lambda j: (0, j)),            # merged per-column params
                _invariant_spec((2 * f_pad, N), lambda j: (0, 0)),  # stacked fwd basis
                _invariant_spec((N, f_pad), lambda j: (0, 0)),      # inverse basis (real)
                _invariant_spec((N, f_pad), lambda j: (0, 0)),      # inverse basis (imag)
            ],
            out_specs=pl.BlockSpec((N, T), lambda j: (0, j)),
        ),
        compiler_params=pltpu.CompilerParams(
            dimension_semantics=("parallel",),
            vmem_limit_bytes=_vmem_limit(need, vmem_cap)),
    )(x2, params, wf, ci, si)

    return out2[:, :M].reshape(N, B, D).transpose(1, 0, 2)


# ----------------------------------------------------------------------------
# Deterministic stand-in "weight generator": mean-pool over N then linear+tanh
# (the torch module takes an arbitrary weight_generator submodule)
# ----------------------------------------------------------------------------
def weight_generator(x, gen_wr, gen_wi):
    B, N, D = x.shape
    pooled = jnp.mean(x, axis=1)                            # (B, D)
    wr = jnp.tanh(pooled @ gen_wr).reshape(B, D, D)
    wi = jnp.tanh(pooled @ gen_wi).reshape(B, D, D)
    return wr, wi


# ----------------------------------------------------------------------------
# Pure-JAX reference mirroring the torch forward exactly
# ----------------------------------------------------------------------------
def _softshrink(v, lam):
    return jnp.where(v > lam, v - lam, jnp.where(v < -lam, v + lam, 0.0))


def reference_forward(x, weight_real, weight_imag, w_hidden, b_hidden, lam=0.01):
    B, N, D = x.shape
    x_freq = jnp.fft.rfft(x, axis=1, norm='ortho')
    xfr = jax.nn.relu(jnp.einsum('bnd,bdd->bnd', x_freq.real, weight_real))
    xfi = jax.nn.relu(jnp.einsum('bnd,bdd->bnd', x_freq.imag, weight_imag))
    xfr = _softshrink(xfr, lam)
    xfi = _softshrink(xfi, lam)
    x_out = jnp.fft.irfft(xfr + 1j * xfi, n=N, axis=1, norm='ortho')
    x_hidden = jax.nn.relu(jnp.einsum('bnd,dd->bnd', x, w_hidden) + b_hidden)
    return x_out + x_hidden


# ----------------------------------------------------------------------------
# Demo / self-test
# ----------------------------------------------------------------------------
def _run_case(case_key, B, N, D, use_bf16, tol):
    k1, k2, k3, k4 = jax.random.split(case_key, 4)
    x = jax.random.normal(k1, (B, N, D), dtype=jnp.float32)

    limit = (6.0 / (D + D)) ** 0.5
    w_hidden = jax.random.uniform(k2, (D, D), minval=-limit, maxval=limit,
                                  dtype=jnp.float32)
    b_hidden = jnp.zeros((D,), jnp.float32)

    gen_wr = 0.1 * jax.random.normal(k3, (D, D * D), dtype=jnp.float32)
    gen_wi = 0.1 * jax.random.normal(k4, (D, D * D), dtype=jnp.float32)
    weight_real, weight_imag = weight_generator(x, gen_wr, gen_wi)

    out = fourier_graph_conv(x, weight_real, weight_imag, w_hidden, b_hidden,
                             sparsity_threshold=0.01, use_bf16_matmul=use_bf16)
    out = jax.block_until_ready(out)

    ref = reference_forward(x, weight_real, weight_imag, w_hidden, b_hidden, 0.01)
    assert out.shape == (B, N, D)
    if not jnp.allclose(out, ref, atol=tol, rtol=tol):
        raise AssertionError(
            f"mismatch (B={B},N={N},D={D},bf16={use_bf16}): "
            f"max abs diff = {jnp.max(jnp.abs(out - ref))}")


if __name__ == "__main__":
    key = jax.random.PRNGKey(0)
    # Path B (lane-dense repack + pad-to-128), exact f32 check.
    _run_case(jax.random.fold_in(key, 0), B=2, N=16, D=32, use_bf16=False, tol=1e-4)
    # Path A (D % 128 == 0: no wrapper repack, 2-D (batch, lane) grid), exact f32 check.
    _run_case(jax.random.fold_in(key, 1), B=2, N=16, D=128, use_bf16=False, tol=1e-4)
    # bf16 MXU operands (f32 accumulate) — expected small precision loss, looser tol.
    _run_case(jax.random.fold_in(key, 2), B=2, N=16, D=32, use_bf16=True, tol=5e-2)
    print("KERNEL_OK")
</pallas_src>

<mosaic_0001>
module attributes {stable_mosaic.version = 11 : i64} {
  func.func @_fgc_kernel(%arg0: i32, %arg1: memref<16x128xf32, #tpu.memory_space<vmem>>, %arg2: memref<4x128xf32, #tpu.memory_space<vmem>>, %arg3: memref<32x16xf32, #tpu.memory_space<vmem>>, %arg4: memref<16x16xf32, #tpu.memory_space<vmem>>, %arg5: memref<16x16xf32, #tpu.memory_space<vmem>>, %arg6: memref<16x128xf32, #tpu.memory_space<vmem>>) attributes {dimension_semantics = [#tpu.dimension_semantics<parallel>], iteration_bounds = array<i64: 1>, scalar_prefetch = 0 : i64, scratch_operands = 0 : i64, tpu.core_type = #tpu.core_type<tc>, window_params = [{transform_indices = @transform_0, window_bounds = array<i64: 16, 128>}, {transform_indices = @transform_1, window_bounds = array<i64: 4, 128>}, {pipeline_mode = #tpu.pipeline_mode<synchronous>, transform_indices = @transform_2, window_bounds = array<i64: 32, 16>}, {pipeline_mode = #tpu.pipeline_mode<synchronous>, transform_indices = @transform_3, window_bounds = array<i64: 16, 16>}, {pipeline_mode = #tpu.pipeline_mode<synchronous>, transform_indices = @transform_4, window_bounds = array<i64: 16, 16>}, {transform_indices = @transform_5, window_bounds = array<i64: 16, 128>}]} {
    %c0 = arith.constant 0 : index
    %c0_0 = arith.constant 0 : index
    %0 = vector.load %arg1[%c0, %c0_0] : memref<16x128xf32, #tpu.memory_space<vmem>>, vector<16x128xf32>
    %c0_1 = arith.constant 0 : index
    %c0_2 = arith.constant 0 : index
    %1 = vector.load %arg2[%c0_1, %c0_2] : memref<4x128xf32, #tpu.memory_space<vmem>>, vector<4x128xf32>
    %c0_3 = arith.constant 0 : index
    %c0_4 = arith.constant 0 : index
    %2 = vector.load %arg3[%c0_3, %c0_4] : memref<32x16xf32, #tpu.memory_space<vmem>>, vector<32x16xf32>
    %cst = arith.constant dense<0.000000e+00> : vector<32x128xf32>
    %3 = tpu.matmul %2, %0, %cst {dimension_numbers = #tpu.dot_dimension_numbers<[1], [0], [0], [1], [0, 0, 1, 1], [], []>} : vector<32x16xf32>, vector<16x128xf32>, vector<32x128xf32> -> vector<32x128xf32>
    %4 = vector.extract_strided_slice %3 {offsets = [0, 0], sizes = [16, 128], strides = [1, 1]} : vector<32x128xf32> to vector<16x128xf32>
    %5 = vector.extract_strided_slice %1 {offsets = [0, 0], sizes = [1, 128], strides = [1, 1]} : vector<4x128xf32> to vector<1x128xf32>
    %6 = vector.broadcast %5 : vector<1x128xf32> to vector<16x128xf32>
    %7 = arith.mulf %4, %6 : vector<16x128xf32>
    %cst_5 = arith.constant 0.00999999977 : f32
    %8 = vector.broadcast %cst_5 : f32 to vector<16x128xf32>
    %9 = arith.subf %7, %8 : vector<16x128xf32>
    %cst_6 = arith.constant 0.000000e+00 : f32
    %10 = vector.broadcast %cst_6 : f32 to vector<16x128xf32>
    %11 = arith.maximumf %9, %10 : vector<16x128xf32>
    %12 = vector.extract_strided_slice %3 {offsets = [16, 0], sizes = [16, 128], strides = [1, 1]} : vector<32x128xf32> to vector<16x128xf32>
    %13 = vector.extract_strided_slice %1 {offsets = [1, 0], sizes = [1, 128], strides = [1, 1]} : vector<4x128xf32> to vector<1x128xf32>
    %14 = vector.broadcast %13 : vector<1x128xf32> to vector<16x128xf32>
    %15 = arith.mulf %12, %14 : vector<16x128xf32>
    %cst_7 = arith.constant 0.00999999977 : f32
    %16 = vector.broadcast %cst_7 : f32 to vector<16x128xf32>
    %17 = arith.subf %15, %16 : vector<16x128xf32>
    %cst_8 = arith.constant 0.000000e+00 : f32
    %18 = vector.broadcast %cst_8 : f32 to vector<16x128xf32>
    %19 = arith.maximumf %17, %18 : vector<16x128xf32>
    %c0_9 = arith.constant 0 : index
    %c0_10 = arith.constant 0 : index
    %20 = vector.load %arg4[%c0_9, %c0_10] : memref<16x16xf32, #tpu.memory_space<vmem>>, vector<16x16xf32>
    %cst_11 = arith.constant dense<0.000000e+00> : vector<16x128xf32>
    %21 = tpu.matmul %20, %11, %cst_11 {dimension_numbers = #tpu.dot_dimension_numbers<[1], [0], [0], [1], [0, 0, 1, 1], [], []>} : vector<16x16xf32>, vector<16x128xf32>, vector<16x128xf32> -> vector<16x128xf32>
    %c0_12 = arith.constant 0 : index
    %c0_13 = arith.constant 0 : index
    %22 = vector.load %arg5[%c0_12, %c0_13] : memref<16x16xf32, #tpu.memory_space<vmem>>, vector<16x16xf32>
    %cst_14 = arith.constant dense<0.000000e+00> : vector<16x128xf32>
    %23 = tpu.matmul %22, %19, %cst_14 {dimension_numbers = #tpu.dot_dimension_numbers<[1], [0], [0], [1], [0, 0, 1, 1], [], []>} : vector<16x16xf32>, vector<16x128xf32>, vector<16x128xf32> -> vector<16x128xf32>
    %24 = arith.addf %21, %23 : vector<16x128xf32>
    %25 = vector.extract_strided_slice %1 {offsets = [2, 0], sizes = [1, 128], strides = [1, 1]} : vector<4x128xf32> to vector<1x128xf32>
    %26 = vector.broadcast %25 : vector<1x128xf32> to vector<16x128xf32>
    %27 = arith.mulf %0, %26 : vector<16x128xf32>
    %28 = vector.extract_strided_slice %1 {offsets = [3, 0], sizes = [1, 128], strides = [1, 1]} : vector<4x128xf32> to vector<1x128xf32>
    %29 = vector.broadcast %28 : vector<1x128xf32> to vector<16x128xf32>
    %30 = arith.addf %27, %29 : vector<16x128xf32>
    %cst_15 = arith.constant 0.000000e+00 : f32
    %31 = vector.broadcast %cst_15 : f32 to vector<16x128xf32>
    %32 = arith.maximumf %30, %31 : vector<16x128xf32>
    %33 = arith.addf %24, %32 : vector<16x128xf32>
    %c0_16 = arith.constant 0 : index
    %c0_17 = arith.constant 0 : index
    %34 = vector.load %arg6[%c0_16, %c0_17] : memref<16x128xf32, #tpu.memory_space<vmem>>, vector<16x128xf32>
    tpu.vector_store %arg6[%c0_16, %c0_17], %33 {strides = array<i32>} : memref<16x128xf32, #tpu.memory_space<vmem>>, vector<16x128xf32>,
    return
  }
  func.func @transform_0(%arg0: i32) -> (i32, i32) {
    %c0_i32 = arith.constant 0 : i32
    %c0_i32_0 = arith.constant 0 : i32
    return %c0_i32, %arg0 : i32, i32
  }
  func.func @transform_1(%arg0: i32) -> (i32, i32) {
    %c0_i32 = arith.constant 0 : i32
    %c0_i32_0 = arith.constant 0 : i32
    return %c0_i32, %arg0 : i32, i32
  }
  func.func @transform_2(%arg0: i32) -> (i32, i32) {
    %c0_i32 = arith.constant 0 : i32
    %c0_i32_0 = arith.constant 0 : i32
    %c0_i32_1 = arith.constant 0 : i32
    return %c0_i32, %c0_i32_0 : i32, i32
  }
  func.func @transform_3(%arg0: i32) -> (i32, i32) {
    %c0_i32 = arith.constant 0 : i32
    %c0_i32_0 = arith.constant 0 : i32
    %c0_i32_1 = arith.constant 0 : i32
    return %c0_i32, %c0_i32_0 : i32, i32
  }
  func.func @transform_4(%arg0: i32) -> (i32, i32) {
    %c0_i32 = arith.constant 0 : i32
    %c0_i32_0 = arith.constant 0 : i32
    %c0_i32_1 = arith.constant 0 : i32
    return %c0_i32, %c0_i32_0 : i32, i32
  }
  func.func @transform_5(%arg0: i32) -> (i32, i32) {
    %c0_i32 = arith.constant 0 : i32
    %c0_i32_0 = arith.constant 0 : i32
    return %c0_i32, %arg0 : i32, i32
  }
}

</mosaic_0001>

<llo_original>
// kernel: tpu_custom_call.1
$region0: #{tpu_custom_call.1}
  #allocation0 [shape = 'u32[]', space=smem, size = 0x4, offset = 0x4, fixed_abs, tag = 'smem constant byte address 0x4 - core index']
  #allocation1 [shape = 'u32[144,128]{1,0:T(1,128)}', space=vmem, size = 0x12000, scoped, tag = 'internal scratch']
  %s0 = inlined_call_operand.vmem [shape: f32[16,128], index: 0, kind: input, shape index: {}]
  %s1 = inlined_call_operand.hbm [shape: f32[4,128], index: 1, kind: input, shape index: {}]
  %s2 = inlined_call_operand.vmem [shape: f32[32,16], index: 2, kind: input, shape index: {}]
  %s3 = inlined_call_operand.vmem [shape: f32[16,16], index: 3, kind: input, shape index: {}]
  %s4 = inlined_call_operand.vmem [shape: f32[16,16], index: 4, kind: input, shape index: {}]
  %s5 = inlined_call_operand.hbm [shape: f32[16,128], index: 5, kind: output, shape index: {}]
  %s6 = sld [smem:[#allocation0]]
  $region34: #{tpu_custom_call.1} parent=0
    _
  %s8 = ssub.s32 1, %s6
  %s9 = scalar_select 0, %s8, %s6
  $region1: #{tpu_custom_call.1} parent=0
    #allocation2 [shape = 'u8[2048]{0}', space=vmem, size = 0x800, scoped, tag = 'input window, operand 1, single buffered']
    #allocation3 [shape = 's32[1]{0}', space=sflag, size = 0x4, scoped, tag = 'scoped memory for tpu_custom_call.1']
    #allocation4 [shape = 's32[1]{0}', space=sflag, size = 0x4, scoped, tag = 'scoped memory for tpu_custom_call.1']
    #allocation5 [shape = 'u8[8192]{0}', space=vmem, size = 0x2000, scoped, tag = 'output window, operand 0, single buffered']
    %10 = vsyncpa [#allocation3], 0
    %11 = vsyncpa [#allocation4], 0
    // Predicated region
    $region2: #{tpu_custom_call.1} parent=1 // pred_check
      _
    $region3: #{tpu_custom_call.1} parent=1 // pred_check_branch
      %13 = sbr.rel (0) target = $region5
    $region4: #{tpu_custom_call.1} parent=1 // pred_region
      _
    $region5: #{tpu_custom_call.1} parent=1 // pred_fallthru
      _
    // Predicated region
    $region6: #{tpu_custom_call.1} parent=1 // pred_check
      _
    $region7: #{tpu_custom_call.1} parent=1 // pred_check_branch
      %15 = sbr.rel (0) target = $region9
    $region8: #{tpu_custom_call.1} parent=1 // pred_region
      %s17 = ssub.s32 64, 64
      %18 = vsyncadd [#allocation3], %s17
      %s20 = sshll.u32 [#allocation2], 4
      %s21 = int_to_ptr.vmem [resolvable:$true] %s20
      %23 = dma.hbm_to_vmem [thread:$0]  %s1, 64, %s21, [#allocation3]
    $region9: #{tpu_custom_call.1} parent=1 // pred_fallthru
      _
    // Predicated region
    $region10: #{tpu_custom_call.1} parent=1 // pred_check
      _
    $region11: #{tpu_custom_call.1} parent=1 // pred_check_branch
      %25 = sbr.rel (0) target = $region13
    $region12: #{tpu_custom_call.1} parent=1 // pred_region
      _
    $region13: #{tpu_custom_call.1} parent=1 // pred_fallthru
      _
    // Predicated region
    $region14: #{tpu_custom_call.1} parent=1 // pred_check
      _
    $region15: #{tpu_custom_call.1} parent=1 // pred_check_branch
      %27 = sbr.rel (0) target = $region17
    $region16: #{tpu_custom_call.1} parent=1 // pred_region
      _
    $region17: #{tpu_custom_call.1} parent=1 // pred_fallthru
      _
    // Predicated region
    $region18: #{tpu_custom_call.1} parent=1 // pred_check
      _
    $region19: #{tpu_custom_call.1} parent=1 // pred_check_branch
      %29 = sbr.rel (0) target = $region21
    $region20: #{tpu_custom_call.1} parent=1 // pred_region
      _
    $region21: #{tpu_custom_call.1} parent=1 // pred_fallthru
      _
    // Predicated region
    $region22: #{tpu_custom_call.1} parent=1 // pred_check
      _
    $region23: #{tpu_custom_call.1} parent=1 // pred_check_branch
      %31 = sbr.rel (0) target = $region25
    $region24: #{tpu_custom_call.1} parent=1 // pred_region
      %32 = dma.done [#allocation3], 64
    $region25: #{tpu_custom_call.1} parent=1 // pred_fallthru
      _
    %v33 = vld [vmem:[%s0] sm:$0xff]
    %v34 = vld [vmem:[%s0 + $0x8] sm:$0xff]
    %v35 = vld [vmem:[#allocation2] sm:$0xf]
    %v36 = vld [vmem:[%s2] sm:$0xff]
    %v37 = vld [vmem:[%s2 + $0x8] sm:$0xff]
    %v38 = vld [vmem:[%s2 + $0x10] sm:$0xff]
    %v39 = vld [vmem:[%s2 + $0x18] sm:$0xff]
    %vm40 = vcmask 130048
    %v42 = vsel %vm40, %v36, 0
    %v45 = vsel %vm40, %v37, 0
    %v48 = vsel %vm40, %v38, 0
    %v51 = vsel %vm40, %v39, 0
    %53 = vmatprep.subr.mxu0 0.0
    %54 = vmatpush1.msra.mxu0 %v33
    %55 = vmatprep.subr.mxu0 0.0
    %56 = vmatpush1.msra.mxu0 %v34
    %57 = vmatprep.subr.mxu0 0.0
    %58 = vmatpush1.msra.mxu0 0.0
    %59 = vmatprep.subr.mxu0 0.0
    %60 = vmatpush1.msra.mxu0 0.0
    %61 = vmatprep.subr.mxu0 0.0
    %62 = vmatpush1.msra.mxu0 0.0
    %63 = vmatprep.subr.mxu0 0.0
    %64 = vmatpush1.msra.mxu0 0.0
    %65 = vmatprep.subr.mxu0 0.0
    %66 = vmatpush1.msra.mxu0 0.0
    %67 = vmatprep.subr.mxu0 0.0
    %68 = vmatpush1.msra.mxu0 0.0
    %69 = vmatprep.subr.mxu0 0.0
    %70 = vmatpush1.msra.mxu0 0.0
    %71 = vmatprep.subr.mxu0 0.0
    %72 = vmatpush1.msra.mxu0 0.0
    %73 = vmatprep.subr.mxu0 0.0
    %74 = vmatpush1.msra.mxu0 0.0
    %75 = vmatprep.subr.mxu0 0.0
    %76 = vmatpush1.msra.mxu0 0.0
    %77 = vmatprep.subr.mxu0 0.0
    %78 = vmatpush1.msra.mxu0 0.0
    %79 = vmatprep.subr.mxu0 0.0
    %80 = vmatpush1.msra.mxu0 0.0
    %81 = vmatprep.subr.mxu0 0.0
    %82 = vmatpush1.msra.mxu0 0.0
    %83 = vmatprep.subr.mxu0 0.0
    %84 = vmatpush1.msra.mxu0 0.0
    %85 = vmatprep.subr.mxu0 0.0
    %86 = vmatpush1.msra.mxu0 0.0
    %87 = vmatprep.subr.mxu0 0.0
    %88 = vmatpush1.msra.mxu0 0.0
    %89 = vmatprep.subr.mxu0 0.0
    %90 = vmatpush1.msra.mxu0 0.0
    %91 = vmatprep.subr.mxu0 0.0
    %92 = vmatpush1.msra.mxu0 0.0
    %93 = vmatprep.subr.mxu0 0.0
    %94 = vmatpush1.msra.mxu0 0.0
    %95 = vmatprep.subr.mxu0 0.0
    %96 = vmatpush1.msra.mxu0 0.0
    %97 = vmatprep.subr.mxu0 0.0
    %98 = vmatpush1.msra.mxu0 0.0
    %99 = vmatprep.subr.mxu0 0.0
    %100 = vmatpush1.msra.mxu0 0.0
    %101 = vmatprep.subr.mxu0 0.0
    %102 = vmatpush1.msra.mxu0 0.0
    %103 = vmatprep.subr.mxu0 0.0
    %104 = vmatpush1.msra.mxu0 0.0
    %105 = vmatprep.subr.mxu0 0.0
    %106 = vmatpush1.msra.mxu0 0.0
    %107 = vmatprep.subr.mxu0 0.0
    %108 = vmatpush1.msra.mxu0 0.0
    %109 = vmatprep.subr.mxu0 0.0
    %110 = vmatpush1.msra.mxu0 0.0
    %111 = vmatprep.subr.mxu0 0.0
    %112 = vmatpush1.msra.mxu0 0.0
    %113 = vmatprep.subr.mxu0 0.0
    %114 = vmatpush1.msra.mxu0 0.0
    %115 = vmatprep.subr.mxu0 0.0
    %116 = vmatpush1.msra.mxu0 0.0
    %117 = vmatprep.mubr.f32.mxu0 0.0
    %118 = vmatmul.mubr.f32.gmra.mrb[0].mxu0 %v42
    %v119 = vpop.f32.mrb[0].mxu0
    %v120 = vadd.f32 0.0, %v119
    %v121 = vpop.f32.mrb[0].mxu0
    %122 = vmatprep.mubr.f32.mxu0 0.0
    %123 = vmatmul.mubr.f32.gmra.mrb[0].mxu0 %v45
    %v124 = vpop.f32.mrb[0].mxu0
    %v125 = vadd.f32 0.0, %v124
    %v126 = vpop.f32.mrb[0].mxu0
    %127 = vmatprep.mubr.f32.mxu0 0.0
    %128 = vmatmul.mubr.f32.gmra.mrb[0].mxu0 %v48
    %v129 = vpop.f32.mrb[0].mxu0
    %v130 = vadd.f32 0.0, %v129
    %v131 = vpop.f32.mrb[0].mxu0
    %132 = vmatprep.mubr.f32.mxu0 0.0
    %133 = vmatmul.mubr.f32.gmra.mrb[0].mxu0 %v51
    %v134 = vpop.f32.mrb[0].mxu0
    %v135 = vadd.f32 0.0, %v134
    %v136 = vpop.f32.mrb[0].mxu0
    %137 = vdwg.mxu0
    %v138 = vlaneseq
    %v139 = vshrl.u32 %v138, 7
    %v140 = vsub.s32 0, %v139
    %v141 = vrot.slane %v35, %v140
    %v142 = vmul.f32 %v120, %v141
    %v143 = vmul.f32 %v125, %v141
    %v144 = vsub.f32 %v142, 0.01
    %v145 = vsub.f32 %v143, 0.01
    %v146 = vmax.f32 %v144, 0.0
    %v147 = vmax.f32 %v145, 0.0
    %v148 = vlaneseq
    %v149 = vshrl.u32 %v148, 7
    %v150 = vsub.s32 1, %v149
    %v151 = vrot.slane %v35, %v150
    %v152 = vmul.f32 %v130, %v151
    %v153 = vmul.f32 %v135, %v151
    %v154 = vsub.f32 %v152, 0.01
    %v155 = vsub.f32 %v153, 0.01
    %v156 = vmax.f32 %v154, 0.0
    %v157 = vmax.f32 %v155, 0.0
    %v158 = vld [vmem:[%s3] sm:$0xff]
    %v159 = vld [vmem:[%s3 + $0x8] sm:$0xff]
    %v160 = vld [vmem:[%s4] sm:$0xff]
    %v161 = vld [vmem:[%s4 + $0x8] sm:$0xff]
    %v163 = vsel %vm40, %v160, 0
    %v166 = vsel %vm40, %v161, 0
    %168 = vmatprep.subr.mxu0 0.0
    %169 = vmatpush1.msra.mxu0 %v156
    %170 = vmatprep.subr.mxu0 0.0
    %171 = vmatpush1.msra.mxu0 %v157
    %172 = vmatprep.subr.mxu0 0.0
    %173 = vmatpush1.msra.mxu0 0.0
    %174 = vmatprep.subr.mxu0 0.0
    %175 = vmatpush1.msra.mxu0 0.0
    %176 = vmatprep.subr.mxu0 0.0
    %177 = vmatpush1.msra.mxu0 0.0
    %178 = vmatprep.subr.mxu0 0.0
    %179 = vmatpush1.msra.mxu0 0.0
    %180 = vmatprep.subr.mxu0 0.0
    %181 = vmatpush1.msra.mxu0 0.0
    %182 = vmatprep.subr.mxu0 0.0
    %183 = vmatpush1.msra.mxu0 0.0
    %184 = vmatprep.subr.mxu0 0.0
    %185 = vmatpush1.msra.mxu0 0.0
    %186 = vmatprep.subr.mxu0 0.0
    %187 = vmatpush1.msra.mxu0 0.0
    %188 = vmatprep.subr.mxu0 0.0
    %189 = vmatpush1.msra.mxu0 0.0
    %190 = vmatprep.subr.mxu0 0.0
    %191 = vmatpush1.msra.mxu0 0.0
    %192 = vmatprep.subr.mxu0 0.0
    %193 = vmatpush1.msra.mxu0 0.0
    %194 = vmatprep.subr.mxu0 0.0
    %195 = vmatpush1.msra.mxu0 0.0
    %196 = vmatprep.subr.mxu0 0.0
    %197 = vmatpush1.msra.mxu0 0.0
    %198 = vmatprep.subr.mxu0 0.0
    %199 = vmatpush1.msra.mxu0 0.0
    %200 = vmatprep.subr.mxu0 0.0
    %201 = vmatpush1.msra.mxu0 0.0
    %202 = vmatprep.subr.mxu0 0.0
    %203 = vmatpush1.msra.mxu0 0.0
    %204 = vmatprep.subr.mxu0 0.0
    %205 = vmatpush1.msra.mxu0 0.0
    %206 = vmatprep.subr.mxu0 0.0
    %207 = vmatpush1.msra.mxu0 0.0
    %208 = vmatprep.subr.mxu0 0.0
    %209 = vmatpush1.msra.mxu0 0.0
    %210 = vmatprep.subr.mxu0 0.0
    %211 = vmatpush1.msra.mxu0 0.0
    %212 = vmatprep.subr.mxu0 0.0
    %213 = vmatpush1.msra.mxu0 0.0
    %214 = vmatprep.subr.mxu0 0.0
    %215 = vmatpush1.msra.mxu0 0.0
    %216 = vmatprep.subr.mxu0 0.0
    %217 = vmatpush1.msra.mxu0 0.0
    %218 = vmatprep.subr.mxu0 0.0
    %219 = vmatpush1.msra.mxu0 0.0
    %220 = vmatprep.subr.mxu0 0.0
    %221 = vmatpush1.msra.mxu0 0.0
    %222 = vmatprep.subr.mxu0 0.0
    %223 = vmatpush1.msra.mxu0 0.0
    %224 = vmatprep.subr.mxu0 0.0
    %225 = vmatpush1.msra.mxu0 0.0
    %226 = vmatprep.subr.mxu0 0.0
    %227 = vmatpush1.msra.mxu0 0.0
    %228 = vmatprep.subr.mxu0 0.0
    %229 = vmatpush1.msra.mxu0 0.0
    %230 = vmatprep.subr.mxu0 0.0
    %231 = vmatpush1.msra.mxu0 0.0
    %232 = vmatprep.mubr.f32.mxu0 0.0
    %233 = vmatmul.mubr.f32.gmra.mrb[0].mxu0 %v163
    %v234 = vpop.f32.mrb[0].mxu0
    %v235 = vadd.f32 0.0, %v234
    %v236 = vpop.f32.mrb[0].mxu0
    %237 = vmatprep.mubr.f32.mxu0 0.0
    %238 = vmatmul.mubr.f32.gmra.mrb[0].mxu0 %v166
    %v239 = vpop.f32.mrb[0].mxu0
    %v240 = vadd.f32 0.0, %v239
    %v241 = vpop.f32.mrb[0].mxu0
    %242 = vdwg.mxu0
    %v244 = vsel %vm40, %v158, 0
    %v247 = vsel %vm40, %v159, 0
    %249 = vmatprep.subr.mxu0 0.0
    %250 = vmatpush1.msra.mxu0 %v146
    %251 = vmatprep.subr.mxu0 0.0
    %252 = vmatpush1.msra.mxu0 %v147
    %253 = vmatprep.subr.mxu0 0.0
    %254 = vmatpush1.msra.mxu0 0.0
    %255 = vmatprep.subr.mxu0 0.0
    %256 = vmatpush1.msra.mxu0 0.0
    %257 = vmatprep.subr.mxu0 0.0
    %258 = vmatpush1.msra.mxu0 0.0
    %259 = vmatprep.subr.mxu0 0.0
    %260 = vmatpush1.msra.mxu0 0.0
    %261 = vmatprep.subr.mxu0 0.0
    %262 = vmatpush1.msra.mxu0 0.0
    %263 = vmatprep.subr.mxu0 0.0
    %264 = vmatpush1.msra.mxu0 0.0
    %265 = vmatprep.subr.mxu0 0.0
    %266 = vmatpush1.msra.mxu0 0.0
    %267 = vmatprep.subr.mxu0 0.0
    %268 = vmatpush1.msra.mxu0 0.0
    %269 = vmatprep.subr.mxu0 0.0
    %270 = vmatpush1.msra.mxu0 0.0
    %271 = vmatprep.subr.mxu0 0.0
    %272 = vmatpush1.msra.mxu0 0.0
    %273 = vmatprep.subr.mxu0 0.0
    %274 = vmatpush1.msra.mxu0 0.0
    %275 = vmatprep.subr.mxu0 0.0
    %276 = vmatpush1.msra.mxu0 0.0
    %277 = vmatprep.subr.mxu0 0.0
    %278 = vmatpush1.msra.mxu0 0.0
    %279 = vmatprep.subr.mxu0 0.0
    %280 = vmatpush1.msra.mxu0 0.0
    %281 = vmatprep.subr.mxu0 0.0
    %282 = vmatpush1.msra.mxu0 0.0
    %283 = vmatprep.subr.mxu0 0.0
    %284 = vmatpush1.msra.mxu0 0.0
    %285 = vmatprep.subr.mxu0 0.0
    %286 = vmatpush1.msra.mxu0 0.0
    %287 = vmatprep.subr.mxu0 0.0
    %288 = vmatpush1.msra.mxu0 0.0
    %289 = vmatprep.subr.mxu0 0.0
    %290 = vmatpush1.msra.mxu0 0.0
    %291 = vmatprep.subr.mxu0 0.0
    %292 = vmatpush1.msra.mxu0 0.0
    %293 = vmatprep.subr.mxu0 0.0
    %294 = vmatpush1.msra.mxu0 0.0
    %295 = vmatprep.subr.mxu0 0.0
    %296 = vmatpush1.msra.mxu0 0.0
    %297 = vmatprep.subr.mxu0 0.0
    %298 = vmatpush1.msra.mxu0 0.0
    %299 = vmatprep.subr.mxu0 0.0
    %300 = vmatpush1.msra.mxu0 0.0
    %301 = vmatprep.subr.mxu0 0.0
    %302 = vmatpush1.msra.mxu0 0.0
    %303 = vmatprep.subr.mxu0 0.0
    %304 = vmatpush1.msra.mxu0 0.0
    %305 = vmatprep.subr.mxu0 0.0
    %306 = vmatpush1.msra.mxu0 0.0
    %307 = vmatprep.subr.mxu0 0.0
    %308 = vmatpush1.msra.mxu0 0.0
    %309 = vmatprep.subr.mxu0 0.0
    %310 = vmatpush1.msra.mxu0 0.0
    %311 = vmatprep.subr.mxu0 0.0
    %312 = vmatpush1.msra.mxu0 0.0
    %313 = vmatprep.mubr.f32.mxu0 0.0
    %314 = vmatmul.mubr.f32.gmra.mrb[0].mxu0 %v244
    %v315 = vpop.f32.mrb[0].mxu0
    %v316 = vadd.f32 %v235, %v315
    %v317 = vpop.f32.mrb[0].mxu0
    %318 = vmatprep.mubr.f32.mxu0 0.0
    %319 = vmatmul.mubr.f32.gmra.mrb[0].mxu0 %v247
    %v320 = vpop.f32.mrb[0].mxu0
    %v321 = vadd.f32 %v240, %v320
    %v322 = vpop.f32.mrb[0].mxu0
    %323 = vdwg.mxu0
    %v324 = vlaneseq
    %v325 = vshrl.u32 %v324, 7
    %v326 = vsub.s32 2, %v325
    %v327 = vrot.slane %v35, %v326
    %v328 = vmul.f32 %v33, %v327
    %v329 = vmul.f32 %v34, %v327
    %v330 = vlaneseq
    %v331 = vshrl.u32 %v330, 7
    %v332 = vsub.s32 3, %v331
    %v333 = vrot.slane %v35, %v332
    %v334 = vadd.f32 %v328, %v333
    %v335 = vadd.f32 %v329, %v333
    %v336 = vmax.f32 %v334, 0.0
    %v337 = vmax.f32 %v335, 0.0
    %v338 = vadd.f32 %v316, %v336
    %v339 = vadd.f32 %v321, %v337
    %340 = vst [vmem:[#allocation5] sm:$0xff] %v338
    %341 = vst [vmem:[#allocation5 + $0x8] sm:$0xff] %v339
    // Predicated region
    $region26: #{tpu_custom_call.1} parent=1 // pred_check
      _
    $region27: #{tpu_custom_call.1} parent=1 // pred_check_branch
      %343 = sbr.rel (0) target = $region29
    $region28: #{tpu_custom_call.1} parent=1 // pred_region
      %s345 = ssub.s32 256, 256
      %346 = vsyncadd [#allocation4], %s345
      %s347 = sshll.u32 [#allocation5], 4
      %s348 = int_to_ptr.vmem [resolvable:$true] %s347
      %353 = dma.vmem_to_hbm [thread:$0]  %s348, 256, %s5, [#allocation4], 128, 128, 8
    $region29: #{tpu_custom_call.1} parent=1 // pred_fallthru
      _
    // Predicated region
    $region30: #{tpu_custom_call.1} parent=1 // pred_check
      _
    $region31: #{tpu_custom_call.1} parent=1 // pred_check_branch
      %355 = sbr.rel (0) target = $region33
    $region32: #{tpu_custom_call.1} parent=1 // pred_region
      %356 = dma.done [#allocation4], 256
    $region33: #{tpu_custom_call.1} parent=1 // pred_fallthru
      _
    %357 = vsyncpa [#allocation3], 1
    %358 = vsyncpa [#allocation4], 1

</llo_original>
